<compile_context>
chip_gen: v5e
topology: v5e:2x2
jax: 0.10.0
libtpu: 0.0.40
codegen_flags: <defaults>
</compile_context>

<pallas_src>
import functools

import jax
import jax.numpy as jnp
from jax.experimental import pallas as pl
from jax.experimental.pallas import tpu as pltpu

TARGET_BLOCK_BYTES = 4 * 1024 * 1024   # ~4 MiB input block in VMEM
OUT_LANES = 128


def _round_up(x, m):
    return (x + m - 1) // m * m


def _moments_kernel(x_ref, o_ref, acc_ref, *, h):
    """Accumulate raw moments of the rg / yb opponent channels for one image."""
    s = pl.program_id(0)           # split index (v7x dual-TC work split)
    t = pl.program_id(2)           # row-tile index within this split
    n_t = pl.num_programs(2)

    @pl.when(t == 0)
    def _init():
        acc_ref[...] = jnp.zeros_like(acc_ref)

    # x_ref block: (3, r_tile, W); channel order (b, g, r) as in PyTorch.
    b_ch = x_ref[0].astype(jnp.float32)
    g_ch = x_ref[1].astype(jnp.float32)
    r_ch = x_ref[2].astype(jnp.float32)

    rg = r_ch - g_ch
    yb = 0.5 * (r_ch + g_ch) - b_ch

    rt, w = rg.shape
    sub = acc_ref.shape[1]

    def accumulate(rg_v, yb_v):
        if sub == 8:
            # Reduce only across whole 8-row sublane groups: pure VPU adds,
            # no cross-lane work in the hot loop.
            def psum(v):
                return jnp.sum(v.reshape(rt // 8, 8, w), axis=0)
        else:
            # Single ragged tile covering the whole (small) image.
            def psum(v):
                return jnp.sum(v, axis=0, keepdims=True)
        acc_ref[0] += psum(rg_v)
        acc_ref[1] += psum(rg_v * rg_v)
        acc_ref[2] += psum(yb_v)
        acc_ref[3] += psum(yb_v * yb_v)

    # True image rows covered by this (possibly ragged / clamped) tile.
    row_start = (s * n_t + t) * rt
    valid = h - row_start                      # may be <= 0 for clamped tiles
    is_full = valid >= rt

    @pl.when(is_full)
    def _full():
        accumulate(rg, yb)

    @pl.when(jnp.logical_not(is_full))
    def _ragged():
        row_ids = jax.lax.broadcasted_iota(jnp.int32, (rt, w), 0)
        keep = row_ids < valid                 # select (not multiply): robust
        zeros = jnp.zeros_like(rg)             # against garbage in OOB rows
        accumulate(jnp.where(keep, rg, zeros), jnp.where(keep, yb, zeros))

    @pl.when(t == n_t - 1)
    def _finalize():
        # Once per (split, image): collapse the (sub, W) partial sums to
        # scalars (off the hot loop) and splat across the output lanes.
        for i in range(4):
            o_ref[i, :] = jnp.broadcast_to(jnp.sum(acc_ref[i]), (OUT_LANES,))


def colorfulness_loss(colorized_image):
    """1 - mean(Hasler-Suesstrunk colorfulness / 109) over the batch."""
    assert len(colorized_image.shape) == 4
    assert colorized_image.shape[1] == 3

    B, C, H, W = colorized_image.shape
    hw = H * W

    # Row-tile plan: ~TARGET_BLOCK_BYTES of VMEM per input block (accounting
    # for lane padding of W to a multiple of 128 inside VMEM).
    itemsize = jnp.dtype(colorized_image.dtype).itemsize
    vmem_per_row = C * _round_up(W, 128) * itemsize
    r_tile = max(8, (TARGET_BLOCK_BYTES // vmem_per_row) // 8 * 8)
    if r_tile >= H:
        r_tile = H                   # whole image in one tile (full-dim block)
    n_tiles = pl.cdiv(H, r_tile)

    split = 2 if n_tiles >= 2 else 1        # keep both v7x TCs busy at B == 1
    t_per_split = pl.cdiv(n_tiles, split)

    def x_index_map(s, b, t):
        # Clamp so the DMA window always overlaps the image; tiles whose true
        # row range is past H contribute nothing (masked in-kernel).
        g = jnp.minimum(s * t_per_split + t, n_tiles - 1)
        return (b, 0, g, 0)

    sub = 8 if r_tile % 8 == 0 else 1

    out = pl.pallas_call(
        functools.partial(_moments_kernel, h=H),
        out_shape=jax.ShapeDtypeStruct((split, B, 4, OUT_LANES), jnp.float32),
        grid_spec=pltpu.PrefetchScalarGridSpec(
            num_scalar_prefetch=0,
            grid=(split, B, t_per_split),
            in_specs=[
                pl.BlockSpec((None, C, r_tile, W), x_index_map),
            ],
            out_specs=pl.BlockSpec((None, None, 4, OUT_LANES),
                                   lambda s, b, t: (s, b, 0, 0)),
            scratch_shapes=[pltpu.VMEM((4, sub, W), jnp.float32)],
        ),
        compiler_params=pltpu.CompilerParams(
            dimension_semantics=("parallel", "parallel", "arbitrary"),
            vmem_limit_bytes=32 * 1024 * 1024,
        ),
    )(colorized_image)

    # (B, 4): [sum rg, sum rg^2, sum yb, sum yb^2] per image.
    moments = jnp.sum(out[:, :, :, 0], axis=0)

    n = jnp.float32(hw)
    s_rg, s_rg2 = moments[:, 0], moments[:, 1]
    s_yb, s_yb2 = moments[:, 2], moments[:, 3]
    mean_rg = s_rg / n
    mean_yb = s_yb / n
    # torch.std default is unbiased (N-1); clamp the cancellation at >= 0.
    var_rg = jnp.maximum(s_rg2 - n * mean_rg * mean_rg, 0.0) / (n - 1.0)
    var_yb = jnp.maximum(s_yb2 - n * mean_yb * mean_yb, 0.0) / (n - 1.0)
    std_rgyb = jnp.sqrt(var_rg + var_yb)
    mean_rgyb = jnp.sqrt(mean_rg * mean_rg + mean_yb * mean_yb)
    colorfulness = std_rgyb + 0.3 * mean_rgyb
    min_c, max_c = 0.0, 109.0
    colorfulness = (colorfulness - min_c) / (max_c - min_c)
    return 1.0 - jnp.mean(colorfulness)


def _reference(x):
    """Pure-JAX port of the PyTorch ColorfulnessLoss.forward."""
    b, g, r = x[:, 0], x[:, 1], x[:, 2]
    rg = r - g
    yb = 0.5 * (r + g) - b
    rg_mean = jnp.mean(rg, axis=(1, 2))
    rg_std = jnp.std(rg, axis=(1, 2), ddof=1)     # torch.std default: unbiased
    yb_mean = jnp.mean(yb, axis=(1, 2))
    yb_std = jnp.std(yb, axis=(1, 2), ddof=1)
    std_rgyb = jnp.sqrt(rg_std ** 2 + yb_std ** 2)
    mean_rgyb = jnp.sqrt(rg_mean ** 2 + yb_mean ** 2)
    colorfulness = (std_rgyb + 0.3 * mean_rgyb) / 109.0
    return 1.0 - jnp.mean(colorfulness)


if __name__ == "__main__":
    key = jax.random.PRNGKey(0)

    B, C, H, W = 2, 3, 16, 16   # ColorfulnessLoss expects 3 (b, g, r) channels
    colorized = jax.random.normal(key, (B, C, H, W), dtype=jnp.float32)

    loss = colorfulness_loss(colorized)
    jax.block_until_ready(loss)

    ref = _reference(colorized)
    assert jnp.allclose(loss, ref, rtol=1e-4, atol=1e-4), (loss, ref)

    print("KERNEL_OK")
</pallas_src>

<mosaic_0001>
module attributes {stable_mosaic.version = 11 : i64} {
  func.func @_moments_kernel(%arg0: i32, %arg1: i32, %arg2: i32, %arg3: memref<1x3x16x16xf32, #tpu.memory_space<vmem>>, %arg4: memref<1x1x4x128xf32, #tpu.memory_space<vmem>>, %arg5: memref<4x8x16xf32, #tpu.memory_space<vmem>>) attributes {dimension_semantics = [#tpu.dimension_semantics<parallel>, #tpu.dimension_semantics<parallel>, #tpu.dimension_semantics<arbitrary>], iteration_bounds = array<i64: 1, 2, 1>, scalar_prefetch = 0 : i64, scratch_operands = 1 : i64, tpu.core_type = #tpu.core_type<tc>, window_params = [{transform_indices = @transform_0, window_bounds = array<i64: 1, 3, 16, 16>}, {transform_indices = @transform_1, window_bounds = array<i64: 1, 1, 4, 128>}]} {
    %c0_i32 = arith.constant 0 : i32
    %0 = arith.cmpi eq, %arg2, %c0_i32 : i32
    %1 = arith.extui %0 : i1 to i32
    %c0_i32_0 = arith.constant 0 : i32
    %2 = arith.cmpi ne, %1, %c0_i32_0 : i32
    scf.if %2 {
      %cst_16 = arith.constant 0.000000e+00 : f32
      %27 = vector.broadcast %cst_16 : f32 to vector<4x8x16xf32>
      %c0_17 = arith.constant 0 : index
      %c0_18 = arith.constant 0 : index
      %c0_19 = arith.constant 0 : index
      %28 = vector.load %arg5[%c0_17, %c0_18, %c0_19] : memref<4x8x16xf32, #tpu.memory_space<vmem>>, vector<4x8x16xf32>
      tpu.vector_store %arg5[%c0_17, %c0_18, %c0_19], %27 {strides = array<i32>} : memref<4x8x16xf32, #tpu.memory_space<vmem>>, vector<4x8x16xf32>,
    } else {
    }
    %c0 = arith.constant 0 : index
    %c0_1 = arith.constant 0 : index
    %c0_2 = arith.constant 0 : index
    %c0_3 = arith.constant 0 : index
    %3 = vector.load %arg3[%c0, %c0_1, %c0_2, %c0_3] : memref<1x3x16x16xf32, #tpu.memory_space<vmem>>, vector<1x1x16x16xf32>
    %4 = vector.shape_cast %3 : vector<1x1x16x16xf32> to vector<16x16xf32>
    %c0_4 = arith.constant 0 : index
    %c1 = arith.constant 1 : index
    %c0_5 = arith.constant 0 : index
    %c0_6 = arith.constant 0 : index
    %5 = vector.load %arg3[%c0_4, %c1, %c0_5, %c0_6] : memref<1x3x16x16xf32, #tpu.memory_space<vmem>>, vector<1x1x16x16xf32>
    %6 = vector.shape_cast %5 : vector<1x1x16x16xf32> to vector<16x16xf32>
    %c0_7 = arith.constant 0 : index
    %c2 = arith.constant 2 : index
    %c0_8 = arith.constant 0 : index
    %c0_9 = arith.constant 0 : index
    %7 = vector.load %arg3[%c0_7, %c2, %c0_8, %c0_9] : memref<1x3x16x16xf32, #tpu.memory_space<vmem>>, vector<1x1x16x16xf32>
    %8 = vector.shape_cast %7 : vector<1x1x16x16xf32> to vector<16x16xf32>
    %9 = arith.subf %8, %6 : vector<16x16xf32>
    %10 = arith.addf %8, %6 : vector<16x16xf32>
    %cst = arith.constant 5.000000e-01 : f32
    %11 = vector.broadcast %cst : f32 to vector<16x16xf32>
    %12 = arith.mulf %11, %10 : vector<16x16xf32>
    %13 = arith.subf %12, %4 : vector<16x16xf32>
    %c1_i32 = arith.constant 1 : i32
    %14 = arith.muli %arg0, %c1_i32 : i32
    %15 = arith.addi %14, %arg2 : i32
    %c16_i32 = arith.constant 16 : i32
    %16 = arith.muli %15, %c16_i32 : i32
    %c16_i32_10 = arith.constant 16 : i32
    %17 = arith.subi %c16_i32_10, %16 : i32
    %c16_i32_11 = arith.constant 16 : i32
    %18 = arith.cmpi sge, %17, %c16_i32_11 : i32
    %19 = arith.extui %18 : i1 to i32
    %c0_i32_12 = arith.constant 0 : i32
    %20 = arith.cmpi ne, %19, %c0_i32_12 : i32
    scf.if %20 {
      %c0_16 = arith.constant 0 : index
      %c0_17 = arith.constant 0 : index
      %c0_18 = arith.constant 0 : index
      %27 = vector.load %arg5[%c0_16, %c0_17, %c0_18] : memref<4x8x16xf32, #tpu.memory_space<vmem>>, vector<1x8x16xf32>
      %28 = vector.shape_cast %27 : vector<1x8x16xf32> to vector<8x16xf32>
      %29 = vector.shape_cast %9 : vector<16x16xf32> to vector<2x8x16xf32>
      %cst_19 = arith.constant dense<0.000000e+00> : vector<8x16xf32>
      %30 = vector.multi_reduction <add>, %29, %cst_19 [0] : vector<2x8x16xf32> to vector<8x16xf32>
      %31 = arith.addf %28, %30 : vector<8x16xf32>
      %c0_20 = arith.constant 0 : index
      %c0_21 = arith.constant 0 : index
      %c0_22 = arith.constant 0 : index
      %32 = vector.load %arg5[%c0_20, %c0_21, %c0_22] : memref<4x8x16xf32, #tpu.memory_space<vmem>>, vector<1x8x16xf32>
      %33 = vector.shape_cast %32 : vector<1x8x16xf32> to vector<8x16xf32>
      %34 = vector.shape_cast %31 : vector<8x16xf32> to vector<1x8x16xf32>
      tpu.vector_store %arg5[%c0_20, %c0_21, %c0_22], %34 {strides = array<i32>} : memref<4x8x16xf32, #tpu.memory_space<vmem>>, vector<1x8x16xf32>,
      %c1_23 = arith.constant 1 : index
      %c0_24 = arith.constant 0 : index
      %c0_25 = arith.constant 0 : index
      %35 = vector.load %arg5[%c1_23, %c0_24, %c0_25] : memref<4x8x16xf32, #tpu.memory_space<vmem>>, vector<1x8x16xf32>
      %36 = vector.shape_cast %35 : vector<1x8x16xf32> to vector<8x16xf32>
      %37 = arith.mulf %9, %9 : vector<16x16xf32>
      %38 = vector.shape_cast %37 : vector<16x16xf32> to vector<2x8x16xf32>
      %cst_26 = arith.constant dense<0.000000e+00> : vector<8x16xf32>
      %39 = vector.multi_reduction <add>, %38, %cst_26 [0] : vector<2x8x16xf32> to vector<8x16xf32>
      %40 = arith.addf %36, %39 : vector<8x16xf32>
      %c1_27 = arith.constant 1 : index
      %c0_28 = arith.constant 0 : index
      %c0_29 = arith.constant 0 : index
      %41 = vector.load %arg5[%c1_27, %c0_28, %c0_29] : memref<4x8x16xf32, #tpu.memory_space<vmem>>, vector<1x8x16xf32>
      %42 = vector.shape_cast %41 : vector<1x8x16xf32> to vector<8x16xf32>
      %43 = vector.shape_cast %40 : vector<8x16xf32> to vector<1x8x16xf32>
      tpu.vector_store %arg5[%c1_27, %c0_28, %c0_29], %43 {strides = array<i32>} : memref<4x8x16xf32, #tpu.memory_space<vmem>>, vector<1x8x16xf32>,
      %c2_30 = arith.constant 2 : index
      %c0_31 = arith.constant 0 : index
      %c0_32 = arith.constant 0 : index
      %44 = vector.load %arg5[%c2_30, %c0_31, %c0_32] : memref<4x8x16xf32, #tpu.memory_space<vmem>>, vector<1x8x16xf32>
      %45 = vector.shape_cast %44 : vector<1x8x16xf32> to vector<8x16xf32>
      %46 = vector.shape_cast %13 : vector<16x16xf32> to vector<2x8x16xf32>
      %cst_33 = arith.constant dense<0.000000e+00> : vector<8x16xf32>
      %47 = vector.multi_reduction <add>, %46, %cst_33 [0] : vector<2x8x16xf32> to vector<8x16xf32>
      %48 = arith.addf %45, %47 : vector<8x16xf32>
      %c2_34 = arith.constant 2 : index
      %c0_35 = arith.constant 0 : index
      %c0_36 = arith.constant 0 : index
      %49 = vector.load %arg5[%c2_34, %c0_35, %c0_36] : memref<4x8x16xf32, #tpu.memory_space<vmem>>, vector<1x8x16xf32>
      %50 = vector.shape_cast %49 : vector<1x8x16xf32> to vector<8x16xf32>
      %51 = vector.shape_cast %48 : vector<8x16xf32> to vector<1x8x16xf32>
      tpu.vector_store %arg5[%c2_34, %c0_35, %c0_36], %51 {strides = array<i32>} : memref<4x8x16xf32, #tpu.memory_space<vmem>>, vector<1x8x16xf32>,
      %c3 = arith.constant 3 : index
      %c0_37 = arith.constant 0 : index
      %c0_38 = arith.constant 0 : index
      %52 = vector.load %arg5[%c3, %c0_37, %c0_38] : memref<4x8x16xf32, #tpu.memory_space<vmem>>, vector<1x8x16xf32>
      %53 = vector.shape_cast %52 : vector<1x8x16xf32> to vector<8x16xf32>
      %54 = arith.mulf %13, %13 : vector<16x16xf32>
      %55 = vector.shape_cast %54 : vector<16x16xf32> to vector<2x8x16xf32>
      %cst_39 = arith.constant dense<0.000000e+00> : vector<8x16xf32>
      %56 = vector.multi_reduction <add>, %55, %cst_39 [0] : vector<2x8x16xf32> to vector<8x16xf32>
      %57 = arith.addf %53, %56 : vector<8x16xf32>
      %c3_40 = arith.constant 3 : index
      %c0_41 = arith.constant 0 : index
      %c0_42 = arith.constant 0 : index
      %58 = vector.load %arg5[%c3_40, %c0_41, %c0_42] : memref<4x8x16xf32, #tpu.memory_space<vmem>>, vector<1x8x16xf32>
      %59 = vector.shape_cast %58 : vector<1x8x16xf32> to vector<8x16xf32>
      %60 = vector.shape_cast %57 : vector<8x16xf32> to vector<1x8x16xf32>
      tpu.vector_store %arg5[%c3_40, %c0_41, %c0_42], %60 {strides = array<i32>} : memref<4x8x16xf32, #tpu.memory_space<vmem>>, vector<1x8x16xf32>,
    } else {
    }
    %true = arith.constant true
    %21 = arith.xori %18, %true : i1
    %22 = arith.extui %21 : i1 to i32
    %c0_i32_13 = arith.constant 0 : i32
    %23 = arith.cmpi ne, %22, %c0_i32_13 : i32
    scf.if %23 {
      %27 = tpu.iota {dimensions = array<i32: 0>} : vector<16x16xi32>
      %28 = vector.broadcast %17 : i32 to vector<16x16xi32>
      %29 = arith.cmpi slt, %27, %28 : vector<16x16xi32>
      %cst_16 = arith.constant 0.000000e+00 : f32
      %30 = vector.broadcast %cst_16 : f32 to vector<16x16xf32>
      %31 = arith.select %29, %9, %30 : vector<16x16xi1>, vector<16x16xf32>
      %32 = arith.select %29, %13, %30 : vector<16x16xi1>, vector<16x16xf32>
      %c0_17 = arith.constant 0 : index
      %c0_18 = arith.constant 0 : index
      %c0_19 = arith.constant 0 : index
      %33 = vector.load %arg5[%c0_17, %c0_18, %c0_19] : memref<4x8x16xf32, #tpu.memory_space<vmem>>, vector<1x8x16xf32>
      %34 = vector.shape_cast %33 : vector<1x8x16xf32> to vector<8x16xf32>
      %35 = vector.shape_cast %31 : vector<16x16xf32> to vector<2x8x16xf32>
      %cst_20 = arith.constant dense<0.000000e+00> : vector<8x16xf32>
      %36 = vector.multi_reduction <add>, %35, %cst_20 [0] : vector<2x8x16xf32> to vector<8x16xf32>
      %37 = arith.addf %34, %36 : vector<8x16xf32>
      %c0_21 = arith.constant 0 : index
      %c0_22 = arith.constant 0 : index
      %c0_23 = arith.constant 0 : index
      %38 = vector.load %arg5[%c0_21, %c0_22, %c0_23] : memref<4x8x16xf32, #tpu.memory_space<vmem>>, vector<1x8x16xf32>
      %39 = vector.shape_cast %38 : vector<1x8x16xf32> to vector<8x16xf32>
      %40 = vector.shape_cast %37 : vector<8x16xf32> to vector<1x8x16xf32>
      tpu.vector_store %arg5[%c0_21, %c0_22, %c0_23], %40 {strides = array<i32>} : memref<4x8x16xf32, #tpu.memory_space<vmem>>, vector<1x8x16xf32>,
      %c1_24 = arith.constant 1 : index
      %c0_25 = arith.constant 0 : index
      %c0_26 = arith.constant 0 : index
      %41 = vector.load %arg5[%c1_24, %c0_25, %c0_26] : memref<4x8x16xf32, #tpu.memory_space<vmem>>, vector<1x8x16xf32>
      %42 = vector.shape_cast %41 : vector<1x8x16xf32> to vector<8x16xf32>
      %43 = arith.mulf %31, %31 : vector<16x16xf32>
      %44 = vector.shape_cast %43 : vector<16x16xf32> to vector<2x8x16xf32>
      %cst_27 = arith.constant dense<0.000000e+00> : vector<8x16xf32>
      %45 = vector.multi_reduction <add>, %44, %cst_27 [0] : vector<2x8x16xf32> to vector<8x16xf32>
      %46 = arith.addf %42, %45 : vector<8x16xf32>
      %c1_28 = arith.constant 1 : index
      %c0_29 = arith.constant 0 : index
      %c0_30 = arith.constant 0 : index
      %47 = vector.load %arg5[%c1_28, %c0_29, %c0_30] : memref<4x8x16xf32, #tpu.memory_space<vmem>>, vector<1x8x16xf32>
      %48 = vector.shape_cast %47 : vector<1x8x16xf32> to vector<8x16xf32>
      %49 = vector.shape_cast %46 : vector<8x16xf32> to vector<1x8x16xf32>
      tpu.vector_store %arg5[%c1_28, %c0_29, %c0_30], %49 {strides = array<i32>} : memref<4x8x16xf32, #tpu.memory_space<vmem>>, vector<1x8x16xf32>,
      %c2_31 = arith.constant 2 : index
      %c0_32 = arith.constant 0 : index
      %c0_33 = arith.constant 0 : index
      %50 = vector.load %arg5[%c2_31, %c0_32, %c0_33] : memref<4x8x16xf32, #tpu.memory_space<vmem>>, vector<1x8x16xf32>
      %51 = vector.shape_cast %50 : vector<1x8x16xf32> to vector<8x16xf32>
      %52 = vector.shape_cast %32 : vector<16x16xf32> to vector<2x8x16xf32>
      %cst_34 = arith.constant dense<0.000000e+00> : vector<8x16xf32>
      %53 = vector.multi_reduction <add>, %52, %cst_34 [0] : vector<2x8x16xf32> to vector<8x16xf32>
      %54 = arith.addf %51, %53 : vector<8x16xf32>
      %c2_35 = arith.constant 2 : index
      %c0_36 = arith.constant 0 : index
      %c0_37 = arith.constant 0 : index
      %55 = vector.load %arg5[%c2_35, %c0_36, %c0_37] : memref<4x8x16xf32, #tpu.memory_space<vmem>>, vector<1x8x16xf32>
      %56 = vector.shape_cast %55 : vector<1x8x16xf32> to vector<8x16xf32>
      %57 = vector.shape_cast %54 : vector<8x16xf32> to vector<1x8x16xf32>
      tpu.vector_store %arg5[%c2_35, %c0_36, %c0_37], %57 {strides = array<i32>} : memref<4x8x16xf32, #tpu.memory_space<vmem>>, vector<1x8x16xf32>,
      %c3 = arith.constant 3 : index
      %c0_38 = arith.constant 0 : index
      %c0_39 = arith.constant 0 : index
      %58 = vector.load %arg5[%c3, %c0_38, %c0_39] : memref<4x8x16xf32, #tpu.memory_space<vmem>>, vector<1x8x16xf32>
      %59 = vector.shape_cast %58 : vector<1x8x16xf32> to vector<8x16xf32>
      %60 = arith.mulf %32, %32 : vector<16x16xf32>
      %61 = vector.shape_cast %60 : vector<16x16xf32> to vector<2x8x16xf32>
      %cst_40 = arith.constant dense<0.000000e+00> : vector<8x16xf32>
      %62 = vector.multi_reduction <add>, %61, %cst_40 [0] : vector<2x8x16xf32> to vector<8x16xf32>
      %63 = arith.addf %59, %62 : vector<8x16xf32>
      %c3_41 = arith.constant 3 : index
      %c0_42 = arith.constant 0 : index
      %c0_43 = arith.constant 0 : index
      %64 = vector.load %arg5[%c3_41, %c0_42, %c0_43] : memref<4x8x16xf32, #tpu.memory_space<vmem>>, vector<1x8x16xf32>
      %65 = vector.shape_cast %64 : vector<1x8x16xf32> to vector<8x16xf32>
      %66 = vector.shape_cast %63 : vector<8x16xf32> to vector<1x8x16xf32>
      tpu.vector_store %arg5[%c3_41, %c0_42, %c0_43], %66 {strides = array<i32>} : memref<4x8x16xf32, #tpu.memory_space<vmem>>, vector<1x8x16xf32>,
    } else {
    }
    %c0_i32_14 = arith.constant 0 : i32
    %24 = arith.cmpi eq, %arg2, %c0_i32_14 : i32
    %25 = arith.extui %24 : i1 to i32
    %c0_i32_15 = arith.constant 0 : i32
    %26 = arith.cmpi ne, %25, %c0_i32_15 : i32
    scf.if %26 {
      %c0_16 = arith.constant 0 : index
      %c0_17 = arith.constant 0 : index
      %c0_18 = arith.constant 0 : index
      %27 = vector.load %arg5[%c0_16, %c0_17, %c0_18] : memref<4x8x16xf32, #tpu.memory_space<vmem>>, vector<1x8x16xf32>
      %28 = vector.shape_cast %27 : vector<1x8x16xf32> to vector<8x16xf32>
      %29 = vector.shape_cast %28 : vector<8x16xf32> to vector<1x8x16xf32>
      %cst_19 = arith.constant dense<0.000000e+00> : vector<1xf32>
      %30 = vector.multi_reduction <add>, %29, %cst_19 [1, 2] : vector<1x8x16xf32> to vector<1xf32>
      %31 = vector.shape_cast %30 : vector<1xf32> to vector<1x1x1xf32>
      %32 = vector.extract %31[0, 0, 0] : f32 from vector<1x1x1xf32>
      %33 = vector.broadcast %32 : f32 to vector<128xf32>
      %c0_20 = arith.constant 0 : index
      %c0_21 = arith.constant 0 : index
      %c0_22 = arith.constant 0 : index
      %c0_23 = arith.constant 0 : index
      %34 = vector.load %arg4[%c0_20, %c0_21, %c0_22, %c0_23] : memref<1x1x4x128xf32, #tpu.memory_space<vmem>>, vector<1x1x1x128xf32>
      %35 = vector.shape_cast %34 : vector<1x1x1x128xf32> to vector<128xf32>
      %36 = vector.shape_cast %33 : vector<128xf32> to vector<1x1x1x128xf32>
      tpu.vector_store %arg4[%c0_20, %c0_21, %c0_22, %c0_23], %36 {strides = array<i32>} : memref<1x1x4x128xf32, #tpu.memory_space<vmem>>, vector<1x1x1x128xf32>,
      %c1_24 = arith.constant 1 : index
      %c0_25 = arith.constant 0 : index
      %c0_26 = arith.constant 0 : index
      %37 = vector.load %arg5[%c1_24, %c0_25, %c0_26] : memref<4x8x16xf32, #tpu.memory_space<vmem>>, vector<1x8x16xf32>
      %38 = vector.shape_cast %37 : vector<1x8x16xf32> to vector<8x16xf32>
      %39 = vector.shape_cast %38 : vector<8x16xf32> to vector<1x8x16xf32>
      %cst_27 = arith.constant dense<0.000000e+00> : vector<1xf32>
      %40 = vector.multi_reduction <add>, %39, %cst_27 [1, 2] : vector<1x8x16xf32> to vector<1xf32>
      %41 = vector.shape_cast %40 : vector<1xf32> to vector<1x1x1xf32>
      %42 = vector.extract %41[0, 0, 0] : f32 from vector<1x1x1xf32>
      %43 = vector.broadcast %42 : f32 to vector<128xf32>
      %c0_28 = arith.constant 0 : index
      %c0_29 = arith.constant 0 : index
      %c1_30 = arith.constant 1 : index
      %c0_31 = arith.constant 0 : index
      %44 = vector.load %arg4[%c0_28, %c0_29, %c1_30, %c0_31] : memref<1x1x4x128xf32, #tpu.memory_space<vmem>>, vector<1x1x1x128xf32>
      %45 = vector.shape_cast %44 : vector<1x1x1x128xf32> to vector<128xf32>
      %46 = vector.shape_cast %43 : vector<128xf32> to vector<1x1x1x128xf32>
      tpu.vector_store %arg4[%c0_28, %c0_29, %c1_30, %c0_31], %46 {strides = array<i32>} : memref<1x1x4x128xf32, #tpu.memory_space<vmem>>, vector<1x1x1x128xf32>,
      %c2_32 = arith.constant 2 : index
      %c0_33 = arith.constant 0 : index
      %c0_34 = arith.constant 0 : index
      %47 = vector.load %arg5[%c2_32, %c0_33, %c0_34] : memref<4x8x16xf32, #tpu.memory_space<vmem>>, vector<1x8x16xf32>
      %48 = vector.shape_cast %47 : vector<1x8x16xf32> to vector<8x16xf32>
      %49 = vector.shape_cast %48 : vector<8x16xf32> to vector<1x8x16xf32>
      %cst_35 = arith.constant dense<0.000000e+00> : vector<1xf32>
      %50 = vector.multi_reduction <add>, %49, %cst_35 [1, 2] : vector<1x8x16xf32> to vector<1xf32>
      %51 = vector.shape_cast %50 : vector<1xf32> to vector<1x1x1xf32>
      %52 = vector.extract %51[0, 0, 0] : f32 from vector<1x1x1xf32>
      %53 = vector.broadcast %52 : f32 to vector<128xf32>
      %c0_36 = arith.constant 0 : index
      %c0_37 = arith.constant 0 : index
      %c2_38 = arith.constant 2 : index
      %c0_39 = arith.constant 0 : index
      %54 = vector.load %arg4[%c0_36, %c0_37, %c2_38, %c0_39] : memref<1x1x4x128xf32, #tpu.memory_space<vmem>>, vector<1x1x1x128xf32>
      %55 = vector.shape_cast %54 : vector<1x1x1x128xf32> to vector<128xf32>
      %56 = vector.shape_cast %53 : vector<128xf32> to vector<1x1x1x128xf32>
      tpu.vector_store %arg4[%c0_36, %c0_37, %c2_38, %c0_39], %56 {strides = array<i32>} : memref<1x1x4x128xf32, #tpu.memory_space<vmem>>, vector<1x1x1x128xf32>,
      %c3 = arith.constant 3 : index
      %c0_40 = arith.constant 0 : index
      %c0_41 = arith.constant 0 : index
      %57 = vector.load %arg5[%c3, %c0_40, %c0_41] : memref<4x8x16xf32, #tpu.memory_space<vmem>>, vector<1x8x16xf32>
      %58 = vector.shape_cast %57 : vector<1x8x16xf32> to vector<8x16xf32>
      %59 = vector.shape_cast %58 : vector<8x16xf32> to vector<1x8x16xf32>
      %cst_42 = arith.constant dense<0.000000e+00> : vector<1xf32>
      %60 = vector.multi_reduction <add>, %59, %cst_42 [1, 2] : vector<1x8x16xf32> to vector<1xf32>
      %61 = vector.shape_cast %60 : vector<1xf32> to vector<1x1x1xf32>
      %62 = vector.extract %61[0, 0, 0] : f32 from vector<1x1x1xf32>
      %63 = vector.broadcast %62 : f32 to vector<128xf32>
      %c0_43 = arith.constant 0 : index
      %c0_44 = arith.constant 0 : index
      %c3_45 = arith.constant 3 : index
      %c0_46 = arith.constant 0 : index
      %64 = vector.load %arg4[%c0_43, %c0_44, %c3_45, %c0_46] : memref<1x1x4x128xf32, #tpu.memory_space<vmem>>, vector<1x1x1x128xf32>
      %65 = vector.shape_cast %64 : vector<1x1x1x128xf32> to vector<128xf32>
      %66 = vector.shape_cast %63 : vector<128xf32> to vector<1x1x1x128xf32>
      tpu.vector_store %arg4[%c0_43, %c0_44, %c3_45, %c0_46], %66 {strides = array<i32>} : memref<1x1x4x128xf32, #tpu.memory_space<vmem>>, vector<1x1x1x128xf32>,
    } else {
    }
    return
  }
  func.func @transform_0(%arg0: i32, %arg1: i32, %arg2: i32) -> (i32, i32, i32, i32) {
    %c1_i32 = arith.constant 1 : i32
    %0 = arith.muli %arg0, %c1_i32 : i32
    %1 = arith.addi %0, %arg2 : i32
    %c0_i32 = arith.constant 0 : i32
    %2 = arith.minsi %1, %c0_i32 : i32
    %c0_i32_0 = arith.constant 0 : i32
    %c0_i32_1 = arith.constant 0 : i32
    %c0_i32_2 = arith.constant 0 : i32
    return %arg1, %c0_i32_0, %2, %c0_i32_1 : i32, i32, i32, i32
  }
  func.func @transform_1(%arg0: i32, %arg1: i32, %arg2: i32) -> (i32, i32, i32, i32) {
    %c0_i32 = arith.constant 0 : i32
    %c0_i32_0 = arith.constant 0 : i32
    %c0_i32_1 = arith.constant 0 : i32
    return %arg0, %arg1, %c0_i32, %c0_i32_0 : i32, i32, i32, i32
  }
}

</mosaic_0001>

<llo_original>
// kernel: tpu_custom_call.1
$region0: #{tpu_custom_call.1}
  #allocation0 [shape = 'u32[]', space=smem, size = 0x4, offset = 0x4, fixed_abs, tag = 'smem constant byte address 0x4 - core index']
  #allocation1 [shape = 'u32[72,128]{1,0:T(1,128)}', space=vmem, size = 0x9000, scoped, tag = 'internal scratch']
  #allocation2 [shape = 'f32[4,8,16]{2,1,0:T(8,128)}', space=vmem, size = 0x4000, scoped, tag = 'scratch operand']
  %s0 = inlined_call_operand.hbm [shape: f32[2,3,16,16], index: 0, kind: input, shape index: {}]
  %s1 = inlined_call_operand.hbm [shape: f32[1,2,4,128], index: 1, kind: output, shape index: {}]
  %s2 = sld [smem:[#allocation0]]
  $region57: #{tpu_custom_call.1} parent=0
    _
  %s4 = ssub.s32 1, %s2
  %s5 = scalar_select 0, %s4, %s2
  $region1: #{tpu_custom_call.1} parent=0
    #allocation3 [shape = 'u8[49152]{0}', space=vmem, size = 0xc000, scoped, tag = 'input window, operand 0']
    #allocation4 [shape = 's32[2]{0}', space=sflag, size = 0x8, scoped, tag = 'scoped memory for tpu_custom_call.1']
    #allocation5 [shape = 's32[2]{0}', space=sflag, size = 0x8, scoped, tag = 'scoped memory for tpu_custom_call.1']
    #allocation6 [shape = 'u8[4096]{0}', space=vmem, size = 0x1000, scoped, tag = 'output window, operand 0']
    %6 = vsyncpa [#allocation4], 0
    %s7 = scalar_lea.sflag [#allocation4], 1
    %8 = vsyncpa %s7, 0
    %9 = vsyncpa [#allocation5], 0
    %s10 = scalar_lea.sflag [#allocation5], 1
    %11 = vsyncpa %s10, 0
    loop: start=0, step=1, limit=4
    $region2: #{tpu_custom_call.1} parent=1 // loop_pre_header
      _
    $region3: #{tpu_custom_call.1} parent=1 // loop_header
      %s13 = sphi 0, %s17
      %p14 = scmp.ge.s32.totalorder %s13, 4
      %s20 = sphi 0, %s39
      %s21 = sphi 0, %s35
      %s22 = sphi 0, %s31
      %s23 = sphi 0, %s20
      %s24 = sphi 0, %s21
      %s25 = sphi 0, %s22
      %s26 = sphi 0, %s23
      %s27 = sphi 0, %s24
      %s28 = sphi 0, %s25
      %s50 = sphi 0, %s52
      %s53 = sphi 0, %s50
      %s54 = sphi 0, %s53
      %s70 = sphi 0, %s54
      %s78 = sphi 0, %s80
      %s81 = sphi 0, %s78
      %s82 = sphi 0, %s81
      %s98 = sphi 0, %s82
    $region4: #{tpu_custom_call.1} parent=1 // loop_header_branch
      %16 = sbr.rel (%p14) target = $region8
    $region5: #{tpu_custom_call.1} parent=1 // loop_body
      %s18 = ssub.s32 %s13, 1
      %s19 = ssub.s32 %s13, 2
      %s29 = sadd.s32 1, %s22
      %p30 = scmp.ge.s32.totalorder %s29, 1
      %s31 = scalar_select %p30, 0, %s29
      %s32 = sadd.s32 1, %s21
      %s33 = scalar_select %p30, %s32, %s21
      %p34 = scmp.ge.s32.totalorder %s33, 2
      %s35 = scalar_select %p34, 0, %s33
      %s36 = sadd.s32 1, %s20
      %s37 = scalar_select %p34, %s36, %s20
      %p38 = scmp.ge.s32.totalorder %s37, 1
      %s39 = scalar_select %p38, 0, %s37
      %s40 = sadd.s32 %s20, %s22
      %p41 = scmp.lt.s32.totalorder %s40, 0
      %s42 = scalar_select %p41, %s40, 0
      %s43 = sadd.s32 %s39, %s31
      %p44 = scmp.lt.s32.totalorder %s43, 0
      %s45 = scalar_select %p44, %s43, 0
      %s46 = ssub.s32 %s21, %s35
      %s47 = ssub.s32 %s42, %s45
      %s48 = sor.u32 %s46, %s47
      %p49 = scmp.eq.s32.totalorder %s48, 0
      %s51 = sadd.s32 %s50, 1
      %s52 = scalar_select %p49, %s50, %s51
      %p55 = pneg %p49
      %p56 = scmp.eq.s32.totalorder %s13, 1
      %p57 = por %p55, %p56
      %p58 = scmp.ne.s32.totalorder %s50, %s53
      %p59 = scmp.eq.s32.totalorder %s13, 0
      %p60 = por %p58, %p59
      %p61 = scmp.ne.s32.totalorder %s50, %s53
      %p62 = scmp.eq.s32.totalorder %s18, 1
      %p63 = por %p61, %p62
      %p64 = scmp.ne.s32.totalorder %s53, %s54
      %p65 = scmp.eq.s32.totalorder %s18, 0
      %p66 = por %p64, %p65
      %p67 = scmp.ne.s32.totalorder %s53, %s54
      %p68 = scmp.eq.s32.totalorder %s19, 1
      %p69 = por %p67, %p68
      %p71 = scmp.ne.s32.totalorder %s54, %s70
      %p72 = scmp.eq.s32.totalorder %s19, 0
      %p73 = por %p71, %p72
      %s74 = ssub.s32 %s20, %s39
      %s75 = ssub.s32 %s21, %s35
      %s76 = sor.u32 %s74, %s75
      %p77 = scmp.eq.s32.totalorder %s76, 0
      %s79 = sadd.s32 %s78, 1
      %s80 = scalar_select %p77, %s78, %s79
      %p83 = pneg %p77
      %p84 = scmp.eq.s32.totalorder %s13, 1
      %p85 = por %p83, %p84
      %p86 = scmp.ne.s32.totalorder %s78, %s81
      %p87 = scmp.eq.s32.totalorder %s13, 0
      %p88 = por %p86, %p87
      %p89 = scmp.ne.s32.totalorder %s78, %s81
      %p90 = scmp.eq.s32.totalorder %s18, 1
      %p91 = por %p89, %p90
      %p92 = scmp.ne.s32.totalorder %s81, %s82
      %p93 = scmp.eq.s32.totalorder %s18, 0
      %p94 = por %p92, %p93
      %p95 = scmp.ne.s32.totalorder %s81, %s82
      %p96 = scmp.eq.s32.totalorder %s19, 1
      %p97 = por %p95, %p96
      %p99 = scmp.ne.s32.totalorder %s82, %s98
      %p100 = scmp.eq.s32.totalorder %s19, 0
      %p101 = por %p99, %p100
      %p102 = scmp.le.s32.totalorder 1, %s13
      %p103 = scmp.lt.s32.totalorder %s13, 3
      %p104 = pnand %p102, %p103
      %p105 = pneg %p104
      // Predicated region
      $region9: #{tpu_custom_call.1} parent=5 // pred_check
        _
      $region10: #{tpu_custom_call.1} parent=5 // pred_check_branch
        %107 = sbr.rel (%p104) target = $region12
      $region11: #{tpu_custom_call.1} parent=5 // pred_region
        %s108 = ssub.s32 %s13, 1
      $region12: #{tpu_custom_call.1} parent=5 // pred_fallthru
        _
      %p109 = scmp.lt.s32.totalorder %s13, 2
      // Predicated region
      $region13: #{tpu_custom_call.1} parent=5 // pred_check
        %p110 = pneg %p109
      $region14: #{tpu_custom_call.1} parent=5 // pred_check_branch
        %112 = sbr.rel (%p110) target = $region16
      $region15: #{tpu_custom_call.1} parent=5 // pred_region
        // Predicated region
        $region17: #{tpu_custom_call.1} parent=15 // pred_check
          %p113 = pneg %p60
        $region18: #{tpu_custom_call.1} parent=15 // pred_check_branch
          %115 = sbr.rel (%p113) target = $region20
        $region19: #{tpu_custom_call.1} parent=15 // pred_region
          %s116 = sand.u32 %s50, 1
          %s117 = scalar_lea.sflag [#allocation4], %s116
          %s118 = sand.u32 %s50, 1
          %s119 = smul.addr %s118, 48
          %s120 = scalar_lea.vmem [#allocation3], %s119
          %s121 = sadd.s32 %s20, %s22
          %p122 = scmp.lt.s32.totalorder %s121, 0
          %s123 = scalar_select %p122, %s121, 0
          %s124 = smul.u32 2, %s123
          %126 = vsyncadd %s117, 0
          %s127 = smul.addr %s21, 6
          %s128 = sadd.s32 %s124, %s127
          %s129 = smul.addr %s128, 8
          %s130 = scalar_lea.hbm %s0, %s129
          %s131 = sshll.u32 %s130, 4
          %s132 = int_to_ptr.hbm [resolvable:$true] %s131
          %s133 = sshll.u32 %s120, 4
          %s134 = int_to_ptr.vmem [resolvable:$true] %s133
          %139 = dma.hbm_to_vmem [thread:$0]  %s132, 768, %s134, %s117, 128, 128, 8
        $region20: #{tpu_custom_call.1} parent=15 // pred_fallthru
          _
      $region16: #{tpu_custom_call.1} parent=5 // pred_fallthru
        _
      %p140 = scmp.le.s32.totalorder 1, %s13
      %p141 = scmp.lt.s32.totalorder %s13, 3
      %p142 = pnand %p140, %p141
      %p143 = pneg %p142
      // Predicated region
      $region21: #{tpu_custom_call.1} parent=5 // pred_check
        _
      $region22: #{tpu_custom_call.1} parent=5 // pred_check_branch
        %145 = sbr.rel (%p142) target = $region24
      $region23: #{tpu_custom_call.1} parent=5 // pred_region
        %s146 = ssub.s32 %s13, 1
        %s147 = sand.u32 %s53, 1
        %s148 = scalar_lea.sflag [#allocation4], %s147
        %s149 = sand.u32 %s53, 1
        %s150 = smul.addr %s149, 48
        %s151 = scalar_lea.vmem [#allocation3], %s150
        // Predicated region
        $region25: #{tpu_custom_call.1} parent=23 // pred_check
          %p152 = pneg %p66
        $region26: #{tpu_custom_call.1} parent=23 // pred_check_branch
          %154 = sbr.rel (%p152) target = $region28
        $region27: #{tpu_custom_call.1} parent=23 // pred_region
          %156 = dma.done %s148, 768
        $region28: #{tpu_custom_call.1} parent=23 // pred_fallthru
          _
        %s157 = sand.u32 %s53, 1
        %s158 = scalar_lea.sflag [#allocation4], %s157
        %s159 = sand.u32 %s53, 1
        %s160 = smul.addr %s159, 48
        %s161 = scalar_lea.vmem [#allocation3], %s160
        %p162 = pneg %p66
        %p163 = pneg %p63
        %p164 = pneg %p94
        %p165 = pneg %p91
        %s166 = sand.u32 %s81, 1
        %s167 = scalar_lea.sflag [#allocation5], %s166
        %s168 = sand.u32 %s81, 1
        %s169 = smul.addr %s168, 4
        %s170 = scalar_lea.vmem [#allocation6], %s169
        %s171 = sadd.s32 %s23, %s25
        %p172 = scmp.lt.s32.totalorder %s171, 0
        %s173 = scalar_select %p172, %s171, 0
        %s174 = smul.u32 2, %s173
        %p175 = scmp.eq.s32.totalorder %s25, 0
        // Predicated region
        $region29: #{tpu_custom_call.1} parent=23 // pred_check
          %p176 = pneg %p175
        $region30: #{tpu_custom_call.1} parent=23 // pred_check_branch
          %178 = sbr.rel (%p176) target = $region32
        $region31: #{tpu_custom_call.1} parent=23 // pred_region
          %vm179 = vcmask 130048
          %180 = vst.msk [vmem:[#allocation2] sm:$0xff] %vm179, 0.0
          %181 = vst.msk [vmem:[#allocation2 + $0x8] sm:$0xff] %vm179, 0.0
          %182 = vst.msk [vmem:[#allocation2 + $0x10] sm:$0xff] %vm179, 0.0
          %183 = vst.msk [vmem:[#allocation2 + $0x18] sm:$0xff] %vm179, 0.0
        $region32: #{tpu_custom_call.1} parent=23 // pred_fallthru
          _
        %v184 = vld [vmem:[%s151] sm:$0xff]
        %v185 = vld [vmem:[%s151 + $0x8] sm:$0xff]
        %s186 = scalar_lea.vmem %s151, 16 [#allocation3]
        %v187 = vld [vmem:[%s186] sm:$0xff]
        %v188 = vld [vmem:[%s186 + $0x8] sm:$0xff]
        %s189 = scalar_lea.vmem %s151, 32 [#allocation3]
        %v190 = vld [vmem:[%s189] sm:$0xff]
        %v191 = vld [vmem:[%s189 + $0x8] sm:$0xff]
        %v192 = vsub.f32 %v190, %v187
        %v193 = vsub.f32 %v191, %v188
        %v194 = vadd.f32 %v190, %v187
        %v195 = vadd.f32 %v191, %v188
        %v196 = vmul.f32 %v194, 0.5
        %v197 = vmul.f32 %v195, 0.5
        %v198 = vsub.f32 %v196, %v184
        %v199 = vsub.f32 %v197, %v185
        %s200 = sadd.s32 %s23, %s25
        %s201 = smul.u32 %s200, 16
        %s202 = ssub.s32 16, %s201
        %p203 = scmp.ge.s32.totalorder %s202, 16
        // Predicated region
        $region33: #{tpu_custom_call.1} parent=23 // pred_check
          %p204 = pneg %p203
        $region34: #{tpu_custom_call.1} parent=23 // pred_check_branch
          %206 = sbr.rel (%p204) target = $region36
        $region35: #{tpu_custom_call.1} parent=23 // pred_region
          %v207 = vld [vmem:[#allocation2] sm:$0xff]
          %vm208 = vcmask 130048
          %v209 = vsel %vm208, %v192, 0.0
          %v210 = vsel %vm208, %v193, 0.0
          %v211 = vadd.f32 %v209, %v210
          %v212 = vadd.f32 %v207, %v211
          %213 = vst.msk [vmem:[#allocation2] sm:$0xff] %vm208, %v212
          %s214 = scalar_lea.vmem [#allocation2], 8
          %v215 = vld [vmem:[%s214] sm:$0xff]
          %v216 = vmul.f32 %v192, %v192
          %v217 = vmul.f32 %v193, %v193
          %v218 = vsel %vm208, %v216, 0.0
          %v219 = vsel %vm208, %v217, 0.0
          %v220 = vadd.f32 %v218, %v219
          %v221 = vadd.f32 %v215, %v220
          %222 = vst.msk [vmem:[%s214] sm:$0xff] %vm208, %v221
          %s223 = scalar_lea.vmem [#allocation2], 16
          %v224 = vld [vmem:[%s223] sm:$0xff]
          %v225 = vsel %vm208, %v198, 0.0
          %v226 = vsel %vm208, %v199, 0.0
          %v227 = vadd.f32 %v225, %v226
          %v228 = vadd.f32 %v224, %v227
          %229 = vst.msk [vmem:[%s223] sm:$0xff] %vm208, %v228
          %s230 = scalar_lea.vmem [#allocation2], 24
          %v231 = vld [vmem:[%s230] sm:$0xff]
          %v232 = vmul.f32 %v198, %v198
          %v233 = vmul.f32 %v199, %v199
          %v234 = vsel %vm208, %v232, 0.0
          %v235 = vsel %vm208, %v233, 0.0
          %v236 = vadd.f32 %v234, %v235
          %v237 = vadd.f32 %v231, %v236
          %238 = vst.msk [vmem:[%s230] sm:$0xff] %vm208, %v237
        $region36: #{tpu_custom_call.1} parent=23 // pred_fallthru
          _
        %p239 = scmp.lt.s32.totalorder %s202, 16
        // Predicated region
        $region37: #{tpu_custom_call.1} parent=23 // pred_check
          %p240 = pneg %p239
        $region38: #{tpu_custom_call.1} parent=23 // pred_check_branch
          %242 = sbr.rel (%p240) target = $region40
        $region39: #{tpu_custom_call.1} parent=23 // pred_region
          %v243 = vlaneseq
          %v244 = vshrl.u32 %v243, 7
          %v245 = vadd.s32 %v244, 8
          %v246 = vstv %s202
          %vm247 = vcmp.lt.s32.totalorder %v244, %v246
          %vm248 = vcmp.lt.s32.totalorder %v245, %v246
          %v249 = vsel %vm247, %v192, 0.0
          %v250 = vsel %vm248, %v193, 0.0
          %v251 = vsel %vm247, %v198, 0.0
          %v252 = vsel %vm248, %v199, 0.0
          %v253 = vld [vmem:[#allocation2] sm:$0xff]
          %vm254 = vcmask 130048
          %v255 = vsel %vm254, %v249, 0.0
          %v256 = vsel %vm254, %v250, 0.0
          %v257 = vadd.f32 %v255, %v256
          %v258 = vadd.f32 %v253, %v257
          %259 = vst.msk [vmem:[#allocation2] sm:$0xff] %vm254, %v258
          %s260 = scalar_lea.vmem [#allocation2], 8
          %v261 = vld [vmem:[%s260] sm:$0xff]
          %v262 = vmul.f32 %v249, %v249
          %v263 = vmul.f32 %v250, %v250
          %v264 = vsel %vm254, %v262, 0.0
          %v265 = vsel %vm254, %v263, 0.0
          %v266 = vadd.f32 %v264, %v265
          %v267 = vadd.f32 %v261, %v266
          %268 = vst.msk [vmem:[%s260] sm:$0xff] %vm254, %v267
          %s269 = scalar_lea.vmem [#allocation2], 16
          %v270 = vld [vmem:[%s269] sm:$0xff]
          %v271 = vsel %vm254, %v251, 0.0
          %v272 = vsel %vm254, %v252, 0.0
          %v273 = vadd.f32 %v271, %v272
          %v274 = vadd.f32 %v270, %v273
          %275 = vst.msk [vmem:[%s269] sm:$0xff] %vm254, %v274
          %s276 = scalar_lea.vmem [#allocation2], 24
          %v277 = vld [vmem:[%s276] sm:$0xff]
          %v278 = vmul.f32 %v251, %v251
          %v279 = vmul.f32 %v252, %v252
          %v280 = vsel %vm254, %v278, 0.0
          %v281 = vsel %vm254, %v279, 0.0
          %v282 = vadd.f32 %v280, %v281
          %v283 = vadd.f32 %v277, %v282
          %284 = vst.msk [vmem:[%s276] sm:$0xff] %vm254, %v283
        $region40: #{tpu_custom_call.1} parent=23 // pred_fallthru
          _
        // Predicated region
        $region41: #{tpu_custom_call.1} parent=23 // pred_check
          %p285 = pneg %p175
        $region42: #{tpu_custom_call.1} parent=23 // pred_check_branch
          %287 = sbr.rel (%p285) target = $region44
        $region43: #{tpu_custom_call.1} parent=23 // pred_region
          %v288 = vld [vmem:[#allocation2] sm:$0xff]
          %vm289 = vcmask 130048
          %v290 = vsel %vm289, %v288, 0.0
          %291 = vadd.xlane.f32.xlu0 %v290
          %v292 = vpop.xlane.xlu0 %291
          %v293 = vrot.slane %v292, 4
          %v294 = vadd.f32 %v292, %v293
          %v295 = vrot.slane %v294, 2
          %v296 = vadd.f32 %v294, %v295
          %v297 = vrot.slane %v296, 1
          %v298 = vadd.f32 %v296, %v297
          %s299 = vtos %v298
          %v300 = vstv %s299
          %301 = vst [vmem:[%s170] sm:$0x1] %v300
          %s302 = scalar_lea.vmem [#allocation2], 8
          %v303 = vld [vmem:[%s302] sm:$0xff]
          %v304 = vsel %vm289, %v303, 0.0
          %305 = vadd.xlane.f32.xlu0 %v304
          %v306 = vpop.xlane.xlu0 %305
          %v307 = vrot.slane %v306, 4
          %v308 = vadd.f32 %v306, %v307
          %v309 = vrot.slane %v308, 2
          %v310 = vadd.f32 %v308, %v309
          %v311 = vrot.slane %v310, 1
          %v312 = vadd.f32 %v310, %v311
          %s313 = vtos %v312
          %v314 = vstv %s313
          %315 = vst [vmem:[%s170 + $0x1] sm:$0x1] %v314
          %s316 = scalar_lea.vmem [#allocation2], 16
          %v317 = vld [vmem:[%s316] sm:$0xff]
          %v318 = vsel %vm289, %v317, 0.0
          %319 = vadd.xlane.f32.xlu0 %v318
          %v320 = vpop.xlane.xlu0 %319
          %v321 = vrot.slane %v320, 4
          %v322 = vadd.f32 %v320, %v321
          %v323 = vrot.slane %v322, 2
          %v324 = vadd.f32 %v322, %v323
          %v325 = vrot.slane %v324, 1
          %v326 = vadd.f32 %v324, %v325
          %s327 = vtos %v326
          %v328 = vstv %s327
          %329 = vst [vmem:[%s170 + $0x2] sm:$0x1] %v328
          %s330 = scalar_lea.vmem [#allocation2], 24
          %v331 = vld [vmem:[%s330] sm:$0xff]
          %v332 = vsel %vm289, %v331, 0.0
          %333 = vadd.xlane.f32.xlu0 %v332
          %v334 = vpop.xlane.xlu0 %333
          %v335 = vrot.slane %v334, 4
          %v336 = vadd.f32 %v334, %v335
          %v337 = vrot.slane %v336, 2
          %v338 = vadd.f32 %v336, %v337
          %v339 = vrot.slane %v338, 1
          %v340 = vadd.f32 %v338, %v339
          %s341 = vtos %v340
          %v342 = vstv %s341
          %343 = vst [vmem:[%s170 + $0x3] sm:$0x1] %v342
        $region44: #{tpu_custom_call.1} parent=23 // pred_fallthru
          _
        %s344 = sand.u32 %s81, 1
        %s345 = scalar_lea.sflag [#allocation5], %s344
        %s346 = sand.u32 %s81, 1
        %s347 = smul.addr %s346, 4
        %s348 = scalar_lea.vmem [#allocation6], %s347
        // Predicated region
        $region45: #{tpu_custom_call.1} parent=23 // pred_check
          %p349 = pneg %p91
        $region46: #{tpu_custom_call.1} parent=23 // pred_check_branch
          %351 = sbr.rel (%p349) target = $region48
        $region47: #{tpu_custom_call.1} parent=23 // pred_region
          %353 = vsyncadd %s345, 0
          %s354 = smul.addr %s23, 2
          %s355 = sadd.s32 %s24, %s354
          %s356 = smul.addr %s355, 4
          %s357 = scalar_lea.hbm %s1, %s356
          %s359 = sshll.u32 %s348, 4
          %s360 = int_to_ptr.vmem [resolvable:$true] %s359
          %s361 = sshll.u32 %s357, 4
          %s362 = int_to_ptr.hbm [resolvable:$true] %s361
          %364 = dma.vmem_to_hbm [thread:$0]  %s360, 64, %s362, %s345
        $region48: #{tpu_custom_call.1} parent=23 // pred_fallthru
          _
      $region24: #{tpu_custom_call.1} parent=5 // pred_fallthru
        _
      %p365 = scmp.le.s32.totalorder 2, %s13
      // Predicated region
      $region49: #{tpu_custom_call.1} parent=5 // pred_check
        %p366 = pneg %p365
      $region50: #{tpu_custom_call.1} parent=5 // pred_check_branch
        %368 = sbr.rel (%p366) target = $region52
      $region51: #{tpu_custom_call.1} parent=5 // pred_region
        %s369 = ssub.s32 %s13, 2
        // Predicated region
        $region53: #{tpu_custom_call.1} parent=51 // pred_check
          %p370 = pneg %p97
        $region54: #{tpu_custom_call.1} parent=51 // pred_check_branch
          %372 = sbr.rel (%p370) target = $region56
        $region55: #{tpu_custom_call.1} parent=51 // pred_region
          %s373 = sand.u32 %s82, 1
          %s374 = scalar_lea.sflag [#allocation5], %s373
          %s375 = sand.u32 %s82, 1
          %s376 = smul.addr %s375, 4
          %s377 = scalar_lea.vmem [#allocation6], %s376
          %379 = dma.done %s374, 64
        $region56: #{tpu_custom_call.1} parent=51 // pred_fallthru
          _
      $region52: #{tpu_custom_call.1} parent=5 // pred_fallthru
        _
    $region6: #{tpu_custom_call.1} parent=1 // loop_footer
      %s17 = sadd.s32 1, %s13
    $region7: #{tpu_custom_call.1} parent=1 // loop_footer_branch
      %12 = sbr.rel target = $region3
    $region8: #{tpu_custom_call.1} parent=1 // loop_exit
      _
    %380 = vsyncpa [#allocation4], 1
    %s381 = scalar_lea.sflag [#allocation4], 1
    %382 = vsyncpa %s381, 1
    %383 = vsyncpa [#allocation5], 1
    %s384 = scalar_lea.sflag [#allocation5], 1
    %385 = vsyncpa %s384, 1

</llo_original>
